<compile_context>
chip_gen: v5e
topology: v5e:2x2
jax: 0.10.0
libtpu: 0.0.40
codegen_flags: <defaults>
</compile_context>

<pallas_src>
import functools

import jax
import jax.numpy as jnp
import numpy as np
from jax.experimental import pallas as pl
from jax.experimental.pallas import tpu as pltpu

LANES = 128            # f32 vreg lane width
SUBLANES = 16          # row blocks are multiples of 16 (native f32 & bf16 packing)
MAX_ROW_BLOCK = 512    # rows of 128 cells per grid step (~3.25 MiB of input blocks)


def _center_reg_loss_kernel(y_pre_ref, y_true_ref, out_ref, *, half_extent):
    """One grid step over a block of flattened grid cells (lane-dense layout).

    y_pre_ref : (8, R_blk, 128)  predicted channels [0,1,2,3,5,6,7,8] (any float dtype)
    y_true_ref: (5, R_blk, 128)  true channels 0..4                   (any float dtype)
    out_ref   : (1, 8, 128) f32  per-block partial sum (per-lane/sublane, unscaled)
    """
    f32 = jnp.float32

    # ---- loads, upcast to f32 in-kernel ----
    t0 = y_true_ref[0].astype(f32)   # cx (cell-normalized)
    t1 = y_true_ref[1].astype(f32)   # cy
    t2 = y_true_ref[2].astype(f32)   # w  (image-normalized)
    t3 = y_true_ref[3].astype(f32)   # h
    obj = y_true_ref[4].astype(f32)  # objectness

    p00 = y_pre_ref[0].astype(f32)   # bbox 0: cx, cy, w, h
    p01 = y_pre_ref[1].astype(f32)
    p02 = y_pre_ref[2].astype(f32)
    p03 = y_pre_ref[3].astype(f32)
    p10 = y_pre_ref[4].astype(f32)   # bbox 1: cx, cy, w, h
    p11 = y_pre_ref[5].astype(f32)
    p12 = y_pre_ref[6].astype(f32)
    p13 = y_pre_ref[7].astype(f32)

    # ---- true box geometry in grid-cell units, computed once ----
    # IoU is translation invariant (the reference's gi/gj offsets cancel) and scale
    # invariant (dividing every pixel coordinate by grid_size leaves the comparison
    # unchanged), so cx/cy are used raw and w/h only need one half-extent constant
    # half_extent = 0.5 * img_size / grid_size = 0.5 * grid_num.
    t_wh = t2 * half_extent
    t_hh = t3 * half_extent
    t_xmin = t0 - t_wh
    t_xmax = t0 + t_wh
    t_ymin = t1 - t_hh
    t_ymax = t1 + t_wh               # reproduces the reference quirk (w_true, not h_true)
    t_area = (t_xmax - t_xmin) * (t_ymax - t_ymin)

    def iou_terms(cx, cy, w_r, h_r):
        """Returns (numerator, denominator) of the IoU against the true box."""
        wh = w_r * half_extent
        hh = h_r * half_extent
        xmin = cx - wh
        xmax = cx + wh
        ymin = cy - hh
        ymax = cy + hh
        ux_min = jnp.maximum(xmin, t_xmin)
        ux_max = jnp.minimum(xmax, t_xmax)
        uy_min = jnp.maximum(ymin, t_ymin)
        uy_max = jnp.minimum(ymax, t_ymax)
        degenerate = jnp.logical_or(ux_min >= ux_max, uy_min >= uy_max)
        area_u = (ux_max - ux_min) * (uy_max - uy_min)
        area_p = (xmax - xmin) * (ymax - ymin)
        numer = jnp.where(degenerate, jnp.zeros_like(area_u), area_u)
        # Use the masked intersection area so an empty intersection can never make
        # the denominator negative (reference never divides in that branch).
        denom = area_p + t_area - numer + 1e-12
        return numer, denom

    n0, d0 = iou_terms(p00, p01, p02, p03)
    n1, d1 = iou_terms(p10, p11, p12, p13)

    # Reference picks bbox 0 only on strict iou0 > iou1, else bbox 1. With d_k > 0
    # (non-negative predicted w/h) the strict comparison is done cross-multiplied
    # (no vector divide). Degenerate boxes have n = 0, preserving the reference's
    # "both degenerate -> bbox 1" tie behaviour.
    pick0 = n0 * d1 > n1 * d0

    dx0 = p00 - t0
    dy0 = p01 - t1
    dx1 = p10 - t0
    dy1 = p11 - t1
    sq = jnp.where(pick0, dx0 * dx0 + dy0 * dy0, dx1 * dx1 + dy1 * dy1)
    contrib = jnp.where(obj == 1.0, sq, jnp.zeros_like(sq))

    # Per-vreg partial sum: pure VALU adds of (8,128) tiles, no cross-lane/XLU
    # reduce, no scalar splat; the store stays a full unmasked (8,128) vst.
    rows, lanes = contrib.shape
    out_ref[0] = jnp.sum(contrib.reshape(rows // 8, 8, lanes), axis=0)


@functools.partial(
    jax.jit,
    static_argnames=("grid_num", "img_size", "lambda_coord", "max_row_block"))
def center_regression_loss(y_pre, y_true, *, grid_num=7, img_size=448,
                           lambda_coord=2, max_row_block=MAX_ROW_BLOCK):
    """y_pre: (B, S, S, >=9), y_true: (B, S, S, >=5) -> shape-(1,) float32 loss."""
    B, si, sj, c_pre = y_pre.shape
    assert (si, sj) == (grid_num, grid_num) and c_pre >= 9 and y_true.shape[-1] >= 5
    n_cells = B * grid_num * grid_num

    # Rows of 128 cells. Row blocks are multiples of 16 sublanes (f32/bf16 packing
    # and the (g,8,128) in-kernel partial reduce); block the row axis so VMEM stays
    # O(block) at large batch and v7x gets >=2 parallel blocks across its 2 TCs.
    n_rows = -(-n_cells // LANES)
    blk_cap = max(SUBLANES, (max_row_block // SUBLANES) * SUBLANES)
    if n_rows <= blk_cap:
        row_blk = -(-n_rows // SUBLANES) * SUBLANES
        rows_pad = row_blk
    else:
        row_blk = blk_cap
        rows_pad = -(-n_rows // row_blk) * row_blk
    num_blocks = rows_pad // row_blk
    n_pad = rows_pad * LANES

    def lane_dense(x):
        # Channel-selected input -> lane-dense (C, rows, 128) slab; kept in the
        # incoming dtype (upcast happens inside the kernel). Padded cells get
        # objectness == 0 and therefore contribute nothing.
        c = x.shape[-1]
        x = jnp.transpose(x, (3, 0, 1, 2)).reshape(c, n_cells)
        if n_pad != n_cells:
            x = jnp.pad(x, ((0, 0), (0, n_pad - n_cells)))
        return x.reshape(c, rows_pad, LANES)

    # Drop the dead confidence channel: pred slab is [0,1,2,3,5,6,7,8] (8 channels).
    yp = lane_dense(jnp.concatenate([y_pre[..., 0:4], y_pre[..., 5:9]], axis=-1))
    yt = lane_dense(y_true[..., 0:5])

    # half_extent = 0.5 * img_size / (img_size / grid_num) = 0.5 * grid_num
    kernel = functools.partial(_center_reg_loss_kernel,
                               half_extent=0.5 * float(grid_num))
    partial_sums = pl.pallas_call(
        kernel,
        out_shape=jax.ShapeDtypeStruct((num_blocks, 8, LANES), jnp.float32),
        grid=(num_blocks,),
        in_specs=[
            pl.BlockSpec((8, row_blk, LANES), lambda i: (0, i, 0)),
            pl.BlockSpec((5, row_blk, LANES), lambda i: (0, i, 0)),
        ],
        out_specs=pl.BlockSpec((1, 8, LANES), lambda i: (i, 0, 0)),
        compiler_params=pltpu.CompilerParams(
            dimension_semantics=("parallel",),
            # Let XLA fuse the slice/transpose/pad producer into the input DMAs
            # instead of materializing an extra HBM copy pass.
            allow_input_fusion=[True, True],
        ),
    )(yp, yt)

    # Dense contiguous reduction of the per-block (8,128) partials, then the
    # lambda_coord / batch scale applied once on the scalar.
    scale = jnp.float32(float(lambda_coord) / float(B))
    return (jnp.sum(partial_sums) * scale).reshape(1)


# ----------------------------- pure-python reference -----------------------------
def _iou_ref(bp, bt, gi, gj, img_size=448, grid_num=7):
    gs = img_size / grid_num
    cx_p = bp[0] * gs + gj * gs
    cy_p = bp[1] * gs + gi * gs
    w_p = bp[2] * img_size
    h_p = bp[3] * img_size
    x_min_p, y_min_p = cx_p - w_p / 2, cy_p - h_p / 2
    x_max_p, y_max_p = cx_p + w_p / 2, cy_p + h_p / 2
    cx_t = bt[0] * gs + gj * gs
    cy_t = bt[1] * gs + gi * gs
    w_t = bt[2] * img_size
    h_t = bt[3] * img_size
    x_min_t, y_min_t = cx_t - w_t / 2, cy_t - h_t / 2
    x_max_t = cx_t + w_t / 2
    y_max_t = cy_t + w_t / 2  # same quirk as the PyTorch reference
    ux_min, ux_max = max(x_min_p, x_min_t), min(x_max_p, x_max_t)
    uy_min, uy_max = max(y_min_p, y_min_t), min(y_max_p, y_max_t)
    if ux_min >= ux_max or uy_min >= uy_max:
        return 0.0
    a_u = (ux_max - ux_min) * (uy_max - uy_min)
    a_p = (x_max_p - x_min_p) * (y_max_p - y_min_p)
    a_t = (x_max_t - x_min_t) * (y_max_t - y_min_t)
    return a_u / (a_p + a_t - a_u + 1e-12)


def _reference(y_pre, y_true, grid_num=7, img_size=448, lambda_coord=2):
    y_pre = np.asarray(y_pre, dtype=np.float32)
    y_true = np.asarray(y_true, dtype=np.float32)
    B = y_pre.shape[0]
    loss = 0.0
    for b in range(B):
        for gi in range(grid_num):
            for gj in range(grid_num):
                if y_true[b, gi, gj, 4] == 1.0:
                    c0 = _iou_ref(y_pre[b, gi, gj, 0:4], y_true[b, gi, gj, 0:4],
                                  gi, gj, img_size, grid_num)
                    c1 = _iou_ref(y_pre[b, gi, gj, 5:9], y_true[b, gi, gj, 0:4],
                                  gi, gj, img_size, grid_num)
                    choose = 0 if c0 > c1 else 1
                    d = (y_pre[b, gi, gj, 5 * choose:5 * choose + 2]
                         - y_true[b, gi, gj, 0:2])
                    loss += lambda_coord * float(np.sum(d * d))
    return np.array([loss / B], dtype=np.float32)


def _make_inputs(key, batch, S=7, C=30):
    k1, k2, k3 = jax.random.split(key, 3)
    y_pre = jax.random.uniform(k1, (batch, S, S, C), dtype=jnp.float32)
    bbox = jax.random.uniform(k2, (batch, S, S, 4), dtype=jnp.float32)
    obj = (jax.random.uniform(k3, (batch, S, S, 1)) > 0.5).astype(jnp.float32)
    rest = jnp.zeros((batch, S, S, C - 5), dtype=jnp.float32)
    return y_pre, jnp.concatenate([bbox, obj, rest], axis=-1)


if __name__ == "__main__":
    # Small case: batch=2, grid=7x7, 30 channels (YOLOv1-style). Single grid step.
    y_pre, y_true = _make_inputs(jax.random.PRNGKey(0), batch=2)
    loss = jax.block_until_ready(center_regression_loss(y_pre, y_true))
    ref = _reference(y_pre, y_true)
    assert loss.shape == (1,)
    assert np.allclose(np.asarray(loss), ref, rtol=1e-4, atol=1e-4), (loss, ref)

    # Multi-block "parallel" path + row padding, exercised at small size by capping
    # the row block. Loose tolerance: a near-tie in the bbox pick may legally resolve
    # differently between the f32 kernel and the f64 python loop (perturbing the loss
    # by <0.2%); structural bugs (masking / padding / block indexing) would be off by
    # far more.
    y_pre2, y_true2 = _make_inputs(jax.random.PRNGKey(1), batch=64)
    loss2 = jax.block_until_ready(
        center_regression_loss(y_pre2, y_true2, max_row_block=16))
    ref2 = _reference(y_pre2, y_true2)
    assert np.allclose(np.asarray(loss2), ref2, rtol=2e-2), (loss2, ref2)

    print("KERNEL_OK")
</pallas_src>

<mosaic_0001>
module attributes {stable_mosaic.version = 11 : i64} {
  func.func @_center_reg_loss_kernel(%arg0: i32, %arg1: memref<8x16x128xf32, #tpu.memory_space<vmem>>, %arg2: memref<5x16x128xf32, #tpu.memory_space<vmem>>, %arg3: memref<1x8x128xf32, #tpu.memory_space<vmem>>) attributes {dimension_semantics = [#tpu.dimension_semantics<parallel>], iteration_bounds = array<i64: 1>, scalar_prefetch = 0 : i64, scratch_operands = 0 : i64, tpu.core_type = #tpu.core_type<tc>, window_params = [{transform_indices = @transform_0, window_bounds = array<i64: 8, 16, 128>}, {transform_indices = @transform_1, window_bounds = array<i64: 5, 16, 128>}, {transform_indices = @transform_2, window_bounds = array<i64: 1, 8, 128>}]} {
    %c0 = arith.constant 0 : index
    %c0_0 = arith.constant 0 : index
    %c0_1 = arith.constant 0 : index
    %0 = vector.load %arg2[%c0, %c0_0, %c0_1] : memref<5x16x128xf32, #tpu.memory_space<vmem>>, vector<1x16x128xf32>
    %1 = vector.shape_cast %0 : vector<1x16x128xf32> to vector<16x128xf32>
    %c1 = arith.constant 1 : index
    %c0_2 = arith.constant 0 : index
    %c0_3 = arith.constant 0 : index
    %2 = vector.load %arg2[%c1, %c0_2, %c0_3] : memref<5x16x128xf32, #tpu.memory_space<vmem>>, vector<1x16x128xf32>
    %3 = vector.shape_cast %2 : vector<1x16x128xf32> to vector<16x128xf32>
    %c2 = arith.constant 2 : index
    %c0_4 = arith.constant 0 : index
    %c0_5 = arith.constant 0 : index
    %4 = vector.load %arg2[%c2, %c0_4, %c0_5] : memref<5x16x128xf32, #tpu.memory_space<vmem>>, vector<1x16x128xf32>
    %5 = vector.shape_cast %4 : vector<1x16x128xf32> to vector<16x128xf32>
    %c3 = arith.constant 3 : index
    %c0_6 = arith.constant 0 : index
    %c0_7 = arith.constant 0 : index
    %6 = vector.load %arg2[%c3, %c0_6, %c0_7] : memref<5x16x128xf32, #tpu.memory_space<vmem>>, vector<1x16x128xf32>
    %7 = vector.shape_cast %6 : vector<1x16x128xf32> to vector<16x128xf32>
    %c4 = arith.constant 4 : index
    %c0_8 = arith.constant 0 : index
    %c0_9 = arith.constant 0 : index
    %8 = vector.load %arg2[%c4, %c0_8, %c0_9] : memref<5x16x128xf32, #tpu.memory_space<vmem>>, vector<1x16x128xf32>
    %9 = vector.shape_cast %8 : vector<1x16x128xf32> to vector<16x128xf32>
    %c0_10 = arith.constant 0 : index
    %c0_11 = arith.constant 0 : index
    %c0_12 = arith.constant 0 : index
    %10 = vector.load %arg1[%c0_10, %c0_11, %c0_12] : memref<8x16x128xf32, #tpu.memory_space<vmem>>, vector<1x16x128xf32>
    %11 = vector.shape_cast %10 : vector<1x16x128xf32> to vector<16x128xf32>
    %c1_13 = arith.constant 1 : index
    %c0_14 = arith.constant 0 : index
    %c0_15 = arith.constant 0 : index
    %12 = vector.load %arg1[%c1_13, %c0_14, %c0_15] : memref<8x16x128xf32, #tpu.memory_space<vmem>>, vector<1x16x128xf32>
    %13 = vector.shape_cast %12 : vector<1x16x128xf32> to vector<16x128xf32>
    %c2_16 = arith.constant 2 : index
    %c0_17 = arith.constant 0 : index
    %c0_18 = arith.constant 0 : index
    %14 = vector.load %arg1[%c2_16, %c0_17, %c0_18] : memref<8x16x128xf32, #tpu.memory_space<vmem>>, vector<1x16x128xf32>
    %15 = vector.shape_cast %14 : vector<1x16x128xf32> to vector<16x128xf32>
    %c3_19 = arith.constant 3 : index
    %c0_20 = arith.constant 0 : index
    %c0_21 = arith.constant 0 : index
    %16 = vector.load %arg1[%c3_19, %c0_20, %c0_21] : memref<8x16x128xf32, #tpu.memory_space<vmem>>, vector<1x16x128xf32>
    %17 = vector.shape_cast %16 : vector<1x16x128xf32> to vector<16x128xf32>
    %c4_22 = arith.constant 4 : index
    %c0_23 = arith.constant 0 : index
    %c0_24 = arith.constant 0 : index
    %18 = vector.load %arg1[%c4_22, %c0_23, %c0_24] : memref<8x16x128xf32, #tpu.memory_space<vmem>>, vector<1x16x128xf32>
    %19 = vector.shape_cast %18 : vector<1x16x128xf32> to vector<16x128xf32>
    %c5 = arith.constant 5 : index
    %c0_25 = arith.constant 0 : index
    %c0_26 = arith.constant 0 : index
    %20 = vector.load %arg1[%c5, %c0_25, %c0_26] : memref<8x16x128xf32, #tpu.memory_space<vmem>>, vector<1x16x128xf32>
    %21 = vector.shape_cast %20 : vector<1x16x128xf32> to vector<16x128xf32>
    %c6 = arith.constant 6 : index
    %c0_27 = arith.constant 0 : index
    %c0_28 = arith.constant 0 : index
    %22 = vector.load %arg1[%c6, %c0_27, %c0_28] : memref<8x16x128xf32, #tpu.memory_space<vmem>>, vector<1x16x128xf32>
    %23 = vector.shape_cast %22 : vector<1x16x128xf32> to vector<16x128xf32>
    %c7 = arith.constant 7 : index
    %c0_29 = arith.constant 0 : index
    %c0_30 = arith.constant 0 : index
    %24 = vector.load %arg1[%c7, %c0_29, %c0_30] : memref<8x16x128xf32, #tpu.memory_space<vmem>>, vector<1x16x128xf32>
    %25 = vector.shape_cast %24 : vector<1x16x128xf32> to vector<16x128xf32>
    %cst = arith.constant 3.500000e+00 : f32
    %26 = vector.broadcast %cst : f32 to vector<16x128xf32>
    %27 = arith.mulf %5, %26 : vector<16x128xf32>
    %cst_31 = arith.constant 3.500000e+00 : f32
    %28 = vector.broadcast %cst_31 : f32 to vector<16x128xf32>
    %29 = arith.mulf %7, %28 : vector<16x128xf32>
    %30 = arith.subf %1, %27 : vector<16x128xf32>
    %31 = arith.addf %1, %27 : vector<16x128xf32>
    %32 = arith.subf %3, %29 : vector<16x128xf32>
    %33 = arith.addf %3, %27 : vector<16x128xf32>
    %34 = arith.subf %31, %30 : vector<16x128xf32>
    %35 = arith.subf %33, %32 : vector<16x128xf32>
    %36 = arith.mulf %34, %35 : vector<16x128xf32>
    %cst_32 = arith.constant 3.500000e+00 : f32
    %37 = vector.broadcast %cst_32 : f32 to vector<16x128xf32>
    %38 = arith.mulf %15, %37 : vector<16x128xf32>
    %cst_33 = arith.constant 3.500000e+00 : f32
    %39 = vector.broadcast %cst_33 : f32 to vector<16x128xf32>
    %40 = arith.mulf %17, %39 : vector<16x128xf32>
    %41 = arith.subf %11, %38 : vector<16x128xf32>
    %42 = arith.addf %11, %38 : vector<16x128xf32>
    %43 = arith.subf %13, %40 : vector<16x128xf32>
    %44 = arith.addf %13, %40 : vector<16x128xf32>
    %45 = arith.maximumf %41, %30 : vector<16x128xf32>
    %46 = arith.minimumf %42, %31 : vector<16x128xf32>
    %47 = arith.maximumf %43, %32 : vector<16x128xf32>
    %48 = arith.minimumf %44, %33 : vector<16x128xf32>
    %49 = arith.cmpf oge, %45, %46 : vector<16x128xf32>
    %50 = arith.cmpf oge, %47, %48 : vector<16x128xf32>
    %51 = arith.ori %49, %50 : vector<16x128xi1>
    %52 = arith.subf %46, %45 : vector<16x128xf32>
    %53 = arith.subf %48, %47 : vector<16x128xf32>
    %54 = arith.mulf %52, %53 : vector<16x128xf32>
    %55 = arith.subf %42, %41 : vector<16x128xf32>
    %56 = arith.subf %44, %43 : vector<16x128xf32>
    %57 = arith.mulf %55, %56 : vector<16x128xf32>
    %cst_34 = arith.constant 0.000000e+00 : f32
    %58 = vector.broadcast %cst_34 : f32 to vector<16x128xf32>
    %59 = arith.select %51, %58, %54 : vector<16x128xi1>, vector<16x128xf32>
    %60 = arith.addf %57, %36 : vector<16x128xf32>
    %61 = arith.subf %60, %59 : vector<16x128xf32>
    %cst_35 = arith.constant 9.99999996E-13 : f32
    %62 = vector.broadcast %cst_35 : f32 to vector<16x128xf32>
    %63 = arith.addf %61, %62 : vector<16x128xf32>
    %cst_36 = arith.constant 3.500000e+00 : f32
    %64 = vector.broadcast %cst_36 : f32 to vector<16x128xf32>
    %65 = arith.mulf %23, %64 : vector<16x128xf32>
    %cst_37 = arith.constant 3.500000e+00 : f32
    %66 = vector.broadcast %cst_37 : f32 to vector<16x128xf32>
    %67 = arith.mulf %25, %66 : vector<16x128xf32>
    %68 = arith.subf %19, %65 : vector<16x128xf32>
    %69 = arith.addf %19, %65 : vector<16x128xf32>
    %70 = arith.subf %21, %67 : vector<16x128xf32>
    %71 = arith.addf %21, %67 : vector<16x128xf32>
    %72 = arith.maximumf %68, %30 : vector<16x128xf32>
    %73 = arith.minimumf %69, %31 : vector<16x128xf32>
    %74 = arith.maximumf %70, %32 : vector<16x128xf32>
    %75 = arith.minimumf %71, %33 : vector<16x128xf32>
    %76 = arith.cmpf oge, %72, %73 : vector<16x128xf32>
    %77 = arith.cmpf oge, %74, %75 : vector<16x128xf32>
    %78 = arith.ori %76, %77 : vector<16x128xi1>
    %79 = arith.subf %73, %72 : vector<16x128xf32>
    %80 = arith.subf %75, %74 : vector<16x128xf32>
    %81 = arith.mulf %79, %80 : vector<16x128xf32>
    %82 = arith.subf %69, %68 : vector<16x128xf32>
    %83 = arith.subf %71, %70 : vector<16x128xf32>
    %84 = arith.mulf %82, %83 : vector<16x128xf32>
    %cst_38 = arith.constant 0.000000e+00 : f32
    %85 = vector.broadcast %cst_38 : f32 to vector<16x128xf32>
    %86 = arith.select %78, %85, %81 : vector<16x128xi1>, vector<16x128xf32>
    %87 = arith.addf %84, %36 : vector<16x128xf32>
    %88 = arith.subf %87, %86 : vector<16x128xf32>
    %cst_39 = arith.constant 9.99999996E-13 : f32
    %89 = vector.broadcast %cst_39 : f32 to vector<16x128xf32>
    %90 = arith.addf %88, %89 : vector<16x128xf32>
    %91 = arith.mulf %59, %90 : vector<16x128xf32>
    %92 = arith.mulf %86, %63 : vector<16x128xf32>
    %93 = arith.cmpf ogt, %91, %92 : vector<16x128xf32>
    %94 = arith.subf %11, %1 : vector<16x128xf32>
    %95 = arith.subf %13, %3 : vector<16x128xf32>
    %96 = arith.subf %19, %1 : vector<16x128xf32>
    %97 = arith.subf %21, %3 : vector<16x128xf32>
    %98 = arith.mulf %94, %94 : vector<16x128xf32>
    %99 = arith.mulf %95, %95 : vector<16x128xf32>
    %100 = arith.addf %98, %99 : vector<16x128xf32>
    %101 = arith.mulf %96, %96 : vector<16x128xf32>
    %102 = arith.mulf %97, %97 : vector<16x128xf32>
    %103 = arith.addf %101, %102 : vector<16x128xf32>
    %104 = arith.select %93, %100, %103 : vector<16x128xi1>, vector<16x128xf32>
    %cst_40 = arith.constant 1.000000e+00 : f32
    %105 = vector.broadcast %cst_40 : f32 to vector<16x128xf32>
    %106 = arith.cmpf oeq, %9, %105 : vector<16x128xf32>
    %cst_41 = arith.constant 0.000000e+00 : f32
    %107 = vector.broadcast %cst_41 : f32 to vector<16x128xf32>
    %108 = arith.select %106, %104, %107 : vector<16x128xi1>, vector<16x128xf32>
    %109 = vector.shape_cast %108 : vector<16x128xf32> to vector<2x8x128xf32>
    %cst_42 = arith.constant dense<0.000000e+00> : vector<8x128xf32>
    %110 = vector.multi_reduction <add>, %109, %cst_42 [0] : vector<2x8x128xf32> to vector<8x128xf32>
    %c0_43 = arith.constant 0 : index
    %c0_44 = arith.constant 0 : index
    %c0_45 = arith.constant 0 : index
    %111 = vector.load %arg3[%c0_43, %c0_44, %c0_45] : memref<1x8x128xf32, #tpu.memory_space<vmem>>, vector<1x8x128xf32>
    %112 = vector.shape_cast %111 : vector<1x8x128xf32> to vector<8x128xf32>
    %113 = vector.shape_cast %110 : vector<8x128xf32> to vector<1x8x128xf32>
    tpu.vector_store %arg3[%c0_43, %c0_44, %c0_45], %113 {strides = array<i32>} : memref<1x8x128xf32, #tpu.memory_space<vmem>>, vector<1x8x128xf32>,
    return
  }
  func.func @transform_0(%arg0: i32) -> (i32, i32, i32) {
    %c0_i32 = arith.constant 0 : i32
    %c0_i32_0 = arith.constant 0 : i32
    %c0_i32_1 = arith.constant 0 : i32
    return %c0_i32, %arg0, %c0_i32_0 : i32, i32, i32
  }
  func.func @transform_1(%arg0: i32) -> (i32, i32, i32) {
    %c0_i32 = arith.constant 0 : i32
    %c0_i32_0 = arith.constant 0 : i32
    %c0_i32_1 = arith.constant 0 : i32
    return %c0_i32, %arg0, %c0_i32_0 : i32, i32, i32
  }
  func.func @transform_2(%arg0: i32) -> (i32, i32, i32) {
    %c0_i32 = arith.constant 0 : i32
    %c0_i32_0 = arith.constant 0 : i32
    %c0_i32_1 = arith.constant 0 : i32
    return %arg0, %c0_i32, %c0_i32_0 : i32, i32, i32
  }
}

</mosaic_0001>

<llo_original>
// kernel: center_regression_loss.2
$region0: #{center_regression_loss.2}
  #allocation0 [shape = 'u32[]', space=smem, size = 0x4, offset = 0x4, fixed_abs, tag = 'smem constant byte address 0x4 - core index']
  #allocation1 [shape = 'u32[72,128]{1,0:T(1,128)}', space=vmem, size = 0x9000, scoped, tag = 'internal scratch']
  %s0 = inlined_call_operand.vmem [shape: f32[1,8,16,128], index: 0, kind: input, shape index: {}]
  %s1 = inlined_call_operand.vmem [shape: f32[1,5,16,128], index: 1, kind: input, shape index: {}]
  %s2 = inlined_call_operand.vmem [shape: f32[1,8,128], index: 2, kind: output, shape index: {}]
  %s3 = sld [smem:[#allocation0]]
  $region18: #{center_regression_loss.2} parent=0
    _
  %s5 = ssub.s32 1, %s3
  %s6 = scalar_select 0, %s5, %s3
  $region1: #{center_regression_loss.2} parent=0
    #allocation2 [shape = 'u8[65536]{0}', space=vmem, size = 0x10000, dematerialized = true, scoped, tag = 'FusionAdapter Buffer %fusion.1 = f32[8,16,128]{2,1,0:T(8,128)} fusion(%param_0.12), kind=kLoop, calls=%fused_computation.1.clone, metadata={op_name="jit(center_regression_loss)/reshape" stack_frame_id=15}']
    #allocation3 [shape = 'u8[40960]{0}', space=vmem, size = 0xa000, dematerialized = true, scoped, tag = 'FusionAdapter Buffer %fusion.2 = f32[5,16,128]{2,1,0:T(8,128)} fusion(%param_1.7), kind=kLoop, calls=%fused_computation.6.clone, metadata={op_name="jit(center_regression_loss)/reshape" stack_frame_id=21}']
    // Predicated region
    $region2: #{center_regression_loss.2} parent=1 // pred_check
      _
    $region3: #{center_regression_loss.2} parent=1 // pred_check_branch
      %8 = sbr.rel (0) target = $region5
    $region4: #{center_regression_loss.2} parent=1 // pred_region
      _
    $region5: #{center_regression_loss.2} parent=1 // pred_fallthru
      _
    // Predicated region
    $region6: #{center_regression_loss.2} parent=1 // pred_check
      _
    $region7: #{center_regression_loss.2} parent=1 // pred_check_branch
      %10 = sbr.rel (0) target = $region9
    $region8: #{center_regression_loss.2} parent=1 // pred_region
      _
    $region9: #{center_regression_loss.2} parent=1 // pred_fallthru
      _
    %v11 = vld [vmem:[%s0] sm:$0xff]
    %s13 = ssub.s32 256, 1
    %14 = vst [vmem:[#allocation2] sm:%s13] %v11
    %s15 = scalar_lea.vmem %s0, 8
    %v16 = vld [vmem:[%s15] sm:$0xff]
    %s17 = scalar_lea.vmem [#allocation2], 8
    %s19 = ssub.s32 256, 1
    %20 = vst [vmem:[%s17] sm:%s19] %v16
    %s21 = scalar_lea.vmem %s0, 16
    %v22 = vld [vmem:[%s21] sm:$0xff]
    %s23 = scalar_lea.vmem [#allocation2], 16
    %s25 = ssub.s32 256, 1
    %26 = vst [vmem:[%s23] sm:%s25] %v22
    %s27 = scalar_lea.vmem %s0, 24
    %v28 = vld [vmem:[%s27] sm:$0xff]
    %s29 = scalar_lea.vmem [#allocation2], 24
    %s31 = ssub.s32 256, 1
    %32 = vst [vmem:[%s29] sm:%s31] %v28
    %s33 = scalar_lea.vmem %s0, 32
    %v34 = vld [vmem:[%s33] sm:$0xff]
    %s35 = scalar_lea.vmem [#allocation2], 32
    %s37 = ssub.s32 256, 1
    %38 = vst [vmem:[%s35] sm:%s37] %v34
    %s39 = scalar_lea.vmem %s0, 40
    %v40 = vld [vmem:[%s39] sm:$0xff]
    %s41 = scalar_lea.vmem [#allocation2], 40
    %s43 = ssub.s32 256, 1
    %44 = vst [vmem:[%s41] sm:%s43] %v40
    %s45 = scalar_lea.vmem %s0, 48
    %v46 = vld [vmem:[%s45] sm:$0xff]
    %s47 = scalar_lea.vmem [#allocation2], 48
    %s49 = ssub.s32 256, 1
    %50 = vst [vmem:[%s47] sm:%s49] %v46
    %s51 = scalar_lea.vmem %s0, 56
    %v52 = vld [vmem:[%s51] sm:$0xff]
    %s53 = scalar_lea.vmem [#allocation2], 56
    %s55 = ssub.s32 256, 1
    %56 = vst [vmem:[%s53] sm:%s55] %v52
    %s57 = scalar_lea.vmem %s0, 64
    %v58 = vld [vmem:[%s57] sm:$0xff]
    %s59 = scalar_lea.vmem [#allocation2], 64
    %s61 = ssub.s32 256, 1
    %62 = vst [vmem:[%s59] sm:%s61] %v58
    %s63 = scalar_lea.vmem %s0, 72
    %v64 = vld [vmem:[%s63] sm:$0xff]
    %s65 = scalar_lea.vmem [#allocation2], 72
    %s67 = ssub.s32 256, 1
    %68 = vst [vmem:[%s65] sm:%s67] %v64
    %s69 = scalar_lea.vmem %s0, 80
    %v70 = vld [vmem:[%s69] sm:$0xff]
    %s71 = scalar_lea.vmem [#allocation2], 80
    %s73 = ssub.s32 256, 1
    %74 = vst [vmem:[%s71] sm:%s73] %v70
    %s75 = scalar_lea.vmem %s0, 88
    %v76 = vld [vmem:[%s75] sm:$0xff]
    %s77 = scalar_lea.vmem [#allocation2], 88
    %s79 = ssub.s32 256, 1
    %80 = vst [vmem:[%s77] sm:%s79] %v76
    %s81 = scalar_lea.vmem %s0, 96
    %v82 = vld [vmem:[%s81] sm:$0xff]
    %s83 = scalar_lea.vmem [#allocation2], 96
    %s85 = ssub.s32 256, 1
    %86 = vst [vmem:[%s83] sm:%s85] %v82
    %s87 = scalar_lea.vmem %s0, 104
    %v88 = vld [vmem:[%s87] sm:$0xff]
    %s89 = scalar_lea.vmem [#allocation2], 104
    %s91 = ssub.s32 256, 1
    %92 = vst [vmem:[%s89] sm:%s91] %v88
    %s93 = scalar_lea.vmem %s0, 112
    %v94 = vld [vmem:[%s93] sm:$0xff]
    %s95 = scalar_lea.vmem [#allocation2], 112
    %s97 = ssub.s32 256, 1
    %98 = vst [vmem:[%s95] sm:%s97] %v94
    %s99 = scalar_lea.vmem %s0, 120
    %v100 = vld [vmem:[%s99] sm:$0xff]
    %s101 = scalar_lea.vmem [#allocation2], 120
    %s103 = ssub.s32 256, 1
    %104 = vst [vmem:[%s101] sm:%s103] %v100
    %v105 = vld [vmem:[%s1] sm:$0xff]
    %s107 = ssub.s32 256, 1
    %108 = vst [vmem:[#allocation3] sm:%s107] %v105
    %s109 = scalar_lea.vmem %s1, 8
    %v110 = vld [vmem:[%s109] sm:$0xff]
    %s111 = scalar_lea.vmem [#allocation3], 8
    %s113 = ssub.s32 256, 1
    %114 = vst [vmem:[%s111] sm:%s113] %v110
    %s115 = scalar_lea.vmem %s1, 16
    %v116 = vld [vmem:[%s115] sm:$0xff]
    %s117 = scalar_lea.vmem [#allocation3], 16
    %s119 = ssub.s32 256, 1
    %120 = vst [vmem:[%s117] sm:%s119] %v116
    %s121 = scalar_lea.vmem %s1, 24
    %v122 = vld [vmem:[%s121] sm:$0xff]
    %s123 = scalar_lea.vmem [#allocation3], 24
    %s125 = ssub.s32 256, 1
    %126 = vst [vmem:[%s123] sm:%s125] %v122
    %s127 = scalar_lea.vmem %s1, 32
    %v128 = vld [vmem:[%s127] sm:$0xff]
    %s129 = scalar_lea.vmem [#allocation3], 32
    %s131 = ssub.s32 256, 1
    %132 = vst [vmem:[%s129] sm:%s131] %v128
    %s133 = scalar_lea.vmem %s1, 40
    %v134 = vld [vmem:[%s133] sm:$0xff]
    %s135 = scalar_lea.vmem [#allocation3], 40
    %s137 = ssub.s32 256, 1
    %138 = vst [vmem:[%s135] sm:%s137] %v134
    %s139 = scalar_lea.vmem %s1, 48
    %v140 = vld [vmem:[%s139] sm:$0xff]
    %s141 = scalar_lea.vmem [#allocation3], 48
    %s143 = ssub.s32 256, 1
    %144 = vst [vmem:[%s141] sm:%s143] %v140
    %s145 = scalar_lea.vmem %s1, 56
    %v146 = vld [vmem:[%s145] sm:$0xff]
    %s147 = scalar_lea.vmem [#allocation3], 56
    %s149 = ssub.s32 256, 1
    %150 = vst [vmem:[%s147] sm:%s149] %v146
    %s151 = scalar_lea.vmem %s1, 64
    %v152 = vld [vmem:[%s151] sm:$0xff]
    %s153 = scalar_lea.vmem [#allocation3], 64
    %s155 = ssub.s32 256, 1
    %156 = vst [vmem:[%s153] sm:%s155] %v152
    %s157 = scalar_lea.vmem %s1, 72
    %v158 = vld [vmem:[%s157] sm:$0xff]
    %s159 = scalar_lea.vmem [#allocation3], 72
    %s161 = ssub.s32 256, 1
    %162 = vst [vmem:[%s159] sm:%s161] %v158
    %v163 = vld [vmem:[#allocation3] sm:$0xff]
    %v164 = vld [vmem:[#allocation3 + $0x8] sm:$0xff]
    %s165 = scalar_lea.vmem [#allocation3], 16
    %v166 = vld [vmem:[%s165] sm:$0xff]
    %v167 = vld [vmem:[%s165 + $0x8] sm:$0xff]
    %s168 = scalar_lea.vmem [#allocation3], 32
    %v169 = vld [vmem:[%s168] sm:$0xff]
    %v170 = vld [vmem:[%s168 + $0x8] sm:$0xff]
    %s171 = scalar_lea.vmem [#allocation3], 48
    %v172 = vld [vmem:[%s171] sm:$0xff]
    %v173 = vld [vmem:[%s171 + $0x8] sm:$0xff]
    %s174 = scalar_lea.vmem [#allocation3], 64
    %v175 = vld [vmem:[%s174] sm:$0xff]
    %v176 = vld [vmem:[%s174 + $0x8] sm:$0xff]
    %v177 = vld [vmem:[#allocation2] sm:$0xff]
    %v178 = vld [vmem:[#allocation2 + $0x8] sm:$0xff]
    %s179 = scalar_lea.vmem [#allocation2], 16
    %v180 = vld [vmem:[%s179] sm:$0xff]
    %v181 = vld [vmem:[%s179 + $0x8] sm:$0xff]
    %s182 = scalar_lea.vmem [#allocation2], 32
    %v183 = vld [vmem:[%s182] sm:$0xff]
    %v184 = vld [vmem:[%s182 + $0x8] sm:$0xff]
    %s185 = scalar_lea.vmem [#allocation2], 48
    %v186 = vld [vmem:[%s185] sm:$0xff]
    %v187 = vld [vmem:[%s185 + $0x8] sm:$0xff]
    %s188 = scalar_lea.vmem [#allocation2], 64
    %v189 = vld [vmem:[%s188] sm:$0xff]
    %v190 = vld [vmem:[%s188 + $0x8] sm:$0xff]
    %s191 = scalar_lea.vmem [#allocation2], 80
    %v192 = vld [vmem:[%s191] sm:$0xff]
    %v193 = vld [vmem:[%s191 + $0x8] sm:$0xff]
    %s194 = scalar_lea.vmem [#allocation2], 96
    %v195 = vld [vmem:[%s194] sm:$0xff]
    %v196 = vld [vmem:[%s194 + $0x8] sm:$0xff]
    %s197 = scalar_lea.vmem [#allocation2], 112
    %v198 = vld [vmem:[%s197] sm:$0xff]
    %v199 = vld [vmem:[%s197 + $0x8] sm:$0xff]
    %v200 = vmul.f32 %v169, 3.5
    %v201 = vmul.f32 %v170, 3.5
    %v202 = vmul.f32 %v172, 3.5
    %v203 = vmul.f32 %v173, 3.5
    %v204 = vsub.f32 %v163, %v200
    %v205 = vsub.f32 %v164, %v201
    %v206 = vadd.f32 %v163, %v200
    %v207 = vadd.f32 %v164, %v201
    %v208 = vsub.f32 %v166, %v202
    %v209 = vsub.f32 %v167, %v203
    %v210 = vadd.f32 %v166, %v200
    %v211 = vadd.f32 %v167, %v201
    %v212 = vsub.f32 %v206, %v204
    %v213 = vsub.f32 %v207, %v205
    %v214 = vsub.f32 %v210, %v208
    %v215 = vsub.f32 %v211, %v209
    %v216 = vmul.f32 %v212, %v214
    %v217 = vmul.f32 %v213, %v215
    %v218 = vmul.f32 %v183, 3.5
    %v219 = vmul.f32 %v184, 3.5
    %v220 = vmul.f32 %v186, 3.5
    %v221 = vmul.f32 %v187, 3.5
    %v222 = vsub.f32 %v177, %v218
    %v223 = vsub.f32 %v178, %v219
    %v224 = vadd.f32 %v177, %v218
    %v225 = vadd.f32 %v178, %v219
    %v226 = vsub.f32 %v180, %v220
    %v227 = vsub.f32 %v181, %v221
    %v228 = vadd.f32 %v180, %v220
    %v229 = vadd.f32 %v181, %v221
    %v230 = vmax.f32 %v222, %v204
    %v231 = vmax.f32 %v223, %v205
    %v232 = vmin.f32 %v224, %v206
    %v233 = vmin.f32 %v225, %v207
    %v234 = vmax.f32 %v226, %v208
    %v235 = vmax.f32 %v227, %v209
    %v236 = vmin.f32 %v228, %v210
    %v237 = vmin.f32 %v229, %v211
    %vm238 = vcmp.ge.f32.partialorder %v230, %v232
    %vm239 = vcmp.ge.f32.partialorder %v231, %v233
    %vm240 = vcmp.ge.f32.partialorder %v234, %v236
    %vm241 = vcmp.ge.f32.partialorder %v235, %v237
    %vm242 = vmor %vm238, %vm240
    %vm243 = vmor %vm239, %vm241
    %v244 = vsub.f32 %v232, %v230
    %v245 = vsub.f32 %v233, %v231
    %v246 = vsub.f32 %v236, %v234
    %v247 = vsub.f32 %v237, %v235
    %v248 = vmul.f32 %v244, %v246
    %v249 = vmul.f32 %v245, %v247
    %v250 = vsub.f32 %v224, %v222
    %v251 = vsub.f32 %v225, %v223
    %v252 = vsub.f32 %v228, %v226
    %v253 = vsub.f32 %v229, %v227
    %v254 = vmul.f32 %v250, %v252
    %v255 = vmul.f32 %v251, %v253
    %v256 = vsel %vm242, 0.0, %v248
    %v257 = vsel %vm243, 0.0, %v249
    %v258 = vadd.f32 %v254, %v216
    %v259 = vadd.f32 %v255, %v217
    %v260 = vsub.f32 %v258, %v256
    %v261 = vsub.f32 %v259, %v257
    %v262 = vadd.f32 %v260, 1e-12
    %v263 = vadd.f32 %v261, 1e-12
    %v264 = vmul.f32 %v195, 3.5
    %v265 = vmul.f32 %v196, 3.5
    %v266 = vmul.f32 %v198, 3.5
    %v267 = vmul.f32 %v199, 3.5
    %v268 = vsub.f32 %v189, %v264
    %v269 = vsub.f32 %v190, %v265
    %v270 = vadd.f32 %v189, %v264
    %v271 = vadd.f32 %v190, %v265
    %v272 = vsub.f32 %v192, %v266
    %v273 = vsub.f32 %v193, %v267
    %v274 = vadd.f32 %v192, %v266
    %v275 = vadd.f32 %v193, %v267
    %v276 = vmax.f32 %v268, %v204
    %v277 = vmax.f32 %v269, %v205
    %v278 = vmin.f32 %v270, %v206
    %v279 = vmin.f32 %v271, %v207
    %v280 = vmax.f32 %v272, %v208
    %v281 = vmax.f32 %v273, %v209
    %v282 = vmin.f32 %v274, %v210
    %v283 = vmin.f32 %v275, %v211
    %vm284 = vcmp.ge.f32.partialorder %v276, %v278
    %vm285 = vcmp.ge.f32.partialorder %v277, %v279
    %vm286 = vcmp.ge.f32.partialorder %v280, %v282
    %vm287 = vcmp.ge.f32.partialorder %v281, %v283
    %vm288 = vmor %vm284, %vm286
    %vm289 = vmor %vm285, %vm287
    %v290 = vsub.f32 %v278, %v276
    %v291 = vsub.f32 %v279, %v277
    %v292 = vsub.f32 %v282, %v280
    %v293 = vsub.f32 %v283, %v281
    %v294 = vmul.f32 %v290, %v292
    %v295 = vmul.f32 %v291, %v293
    %v296 = vsub.f32 %v270, %v268
    %v297 = vsub.f32 %v271, %v269
    %v298 = vsub.f32 %v274, %v272
    %v299 = vsub.f32 %v275, %v273
    %v300 = vmul.f32 %v296, %v298
    %v301 = vmul.f32 %v297, %v299
    %v302 = vsel %vm288, 0.0, %v294
    %v303 = vsel %vm289, 0.0, %v295
    %v304 = vadd.f32 %v300, %v216
    %v305 = vadd.f32 %v301, %v217
    %v306 = vsub.f32 %v304, %v302
    %v307 = vsub.f32 %v305, %v303
    %v308 = vadd.f32 %v306, 1e-12
    %v309 = vadd.f32 %v307, 1e-12
    %v310 = vmul.f32 %v256, %v308
    %v311 = vmul.f32 %v257, %v309
    %v312 = vmul.f32 %v302, %v262
    %v313 = vmul.f32 %v303, %v263
    %vm314 = vcmp.gt.f32.partialorder %v310, %v312
    %vm315 = vcmp.gt.f32.partialorder %v311, %v313
    %v316 = vsub.f32 %v177, %v163
    %v317 = vsub.f32 %v178, %v164
    %v318 = vsub.f32 %v180, %v166
    %v319 = vsub.f32 %v181, %v167
    %v320 = vsub.f32 %v189, %v163
    %v321 = vsub.f32 %v190, %v164
    %v322 = vsub.f32 %v192, %v166
    %v323 = vsub.f32 %v193, %v167
    %v324 = vmul.f32 %v316, %v316
    %v325 = vmul.f32 %v317, %v317
    %v326 = vmul.f32 %v318, %v318
    %v327 = vmul.f32 %v319, %v319
    %v328 = vadd.f32 %v324, %v326
    %v329 = vadd.f32 %v325, %v327
    %v330 = vmul.f32 %v320, %v320
    %v331 = vmul.f32 %v321, %v321
    %v332 = vmul.f32 %v322, %v322
    %v333 = vmul.f32 %v323, %v323
    %v334 = vadd.f32 %v330, %v332
    %v335 = vadd.f32 %v331, %v333
    %v336 = vsel %vm314, %v328, %v334
    %v337 = vsel %vm315, %v329, %v335
    %vm338 = vcmp.eq.f32.partialorder %v175, 1.0
    %vm339 = vcmp.eq.f32.partialorder %v176, 1.0
    %v340 = vsel %vm338, %v336, 0.0
    %v341 = vsel %vm339, %v337, 0.0
    %v342 = vadd.f32 %v340, %v341
    %343 = vst [vmem:[%s2] sm:$0xff] %v342
    // Predicated region
    $region10: #{center_regression_loss.2} parent=1 // pred_check
      _
    $region11: #{center_regression_loss.2} parent=1 // pred_check_branch
      %345 = sbr.rel (0) target = $region13
    $region12: #{center_regression_loss.2} parent=1 // pred_region
      _
    $region13: #{center_regression_loss.2} parent=1 // pred_fallthru
      _
    // Predicated region
    $region14: #{center_regression_loss.2} parent=1 // pred_check
      _
    $region15: #{center_regression_loss.2} parent=1 // pred_check_branch
      %347 = sbr.rel (0) target = $region17
    $region16: #{center_regression_loss.2} parent=1 // pred_region
      _
    $region17: #{center_regression_loss.2} parent=1 // pred_fallthru
      _

</llo_original>
